<compile_context>
chip_gen: v6e
topology: v6e:2x2x1
jax: 0.10.0
libtpu: 0.0.40
codegen_flags: <defaults>
</compile_context>

<pallas_src>
import functools

import jax
import jax.numpy as jnp
from jax.experimental import pallas as pl
from jax.experimental.pallas import tpu as pltpu

LEAKY_SLOPE = 0.01     # nn.LeakyReLU default negative_slope
BN_EPS = 1e-5          # nn.BatchNorm1d default eps
NEG_MASK = -1e30       # bias for padded expert lanes -> exp underflows to 0

H1 = 128
H2 = 256
NE_PAD = 128           # expert logits computed lane-dense, stored narrow


def _round_up(n, m):
    return ((n + m - 1) // m) * m


# -----------------------------------------------------------------------------
# Kernel
# -----------------------------------------------------------------------------
def _gating_kernel(x_ref, w1_ref, b1_ref, w2_ref, b2_ref, w3_ref, b3_ref,
                   out_ref, *, num_experts):
    wdt = w1_ref.dtype                       # f32 by default, bf16 optional
    x = x_ref[...].astype(wdt)

    # ---- Linear1 (+ folded BN1) + LeakyReLU (dropout = identity in eval) ----
    h = jnp.dot(x, w1_ref[...], preferred_element_type=jnp.float32) + b1_ref[...]
    h = jnp.maximum(h, LEAKY_SLOPE * h)

    # ---- Linear2 (+ folded BN2) + LeakyReLU (dropout = identity in eval) ----
    h = jnp.dot(h.astype(wdt), w2_ref[...],
                preferred_element_type=jnp.float32) + b2_ref[...]
    h = jnp.maximum(h, LEAKY_SLOPE * h)

    # ---- Linear3 + softmax over lane-padded expert logits ----
    # Padded lanes carry bias = NEG_MASK -> exp() == 0, so they do not pollute
    # the max / denominator; only the first num_experts lanes are stored.
    logits = jnp.dot(h.astype(wdt), w3_ref[...],
                     preferred_element_type=jnp.float32) + b3_ref[...]
    m = jnp.max(logits, axis=1, keepdims=True)
    e = jnp.exp(logits - m)
    denom = jnp.sum(e, axis=1, keepdims=True)
    r = pl.reciprocal(denom, approx=True)     # EUP slot
    r = r * (2.0 - denom * r)                 # one Newton step -> f32 accuracy
    sm = e * r
    out_ref[...] = sm[:, :num_experts].astype(out_ref.dtype)


# -----------------------------------------------------------------------------
# One-time parameter preparation (hoisted out of the forward pass)
# -----------------------------------------------------------------------------
def _fold_bn(w, b, g, beta, rm, rv):
    """Fold eval-mode BatchNorm1d into the preceding Linear."""
    scale = g * jax.lax.rsqrt(rv + BN_EPS)           # (1, n)
    w_f = w * scale                                   # broadcast over rows
    b_f = (b - rm) * scale + beta                     # (1, n)
    return w_f, b_f


def prepare_gating_params(params, compute_dtype=jnp.float32):
    """Fold BN into the Linears and pad the expert dim. Call once (weights are
    static in eval mode); the result is reused by every gating_forward call."""
    num_experts = params["w3"].shape[1]
    input_dim = params["w1"].shape[0]

    w1f, b1f = _fold_bn(params["w1"], params["b1"], params["g1"],
                        params["be1"], params["rm1"], params["rv1"])
    w2f, b2f = _fold_bn(params["w2"], params["b2"], params["g2"],
                        params["be2"], params["rm2"], params["rv2"])

    # Pad experts: zero weight columns, NEG_MASK bias -> exp()==0 in softmax.
    w3p = jnp.zeros((H2, NE_PAD), compute_dtype).at[:, :num_experts].set(
        params["w3"].astype(compute_dtype))
    b3p = jnp.full((1, NE_PAD), NEG_MASK, jnp.float32).at[:, :num_experts].set(
        params["b3"].astype(jnp.float32))

    return dict(
        w1=w1f.astype(compute_dtype), b1=b1f.astype(jnp.float32),
        w2=w2f.astype(compute_dtype), b2=b2f.astype(jnp.float32),
        w3=w3p, b3=b3p,
        num_experts=num_experts, input_dim=input_dim,
    )


# -----------------------------------------------------------------------------
# Forward wrapper
# -----------------------------------------------------------------------------
def gating_forward(x, prep, *, tile_m=1024):
    """x: (batch, input_dim) -> (batch, num_experts) softmax weights."""
    batch, in_dim = x.shape
    assert in_dim == prep["input_dim"]
    num_experts = prep["num_experts"]

    x = x.astype(jnp.float32)

    # Batch tile: as large as reasonable (per-step pipeline overhead ~0.35us),
    # multiple of 8, capped at the (rounded-up) batch. No host-side padding:
    # Pallas pads reads / masks writes for the partial last tile.
    # On v7x pick tile_m so the grid has >= 2 steps to use both TensorCores.
    tm = min(_round_up(batch, 8), _round_up(tile_m, 8))
    grid = (pl.cdiv(batch, tm),)

    kernel = functools.partial(_gating_kernel, num_experts=num_experts)

    in_specs = [
        pl.BlockSpec((tm, in_dim), lambda i: (i, 0)),    # x tile (pipelined)
        pl.BlockSpec((in_dim, H1), lambda i: (0, 0)),    # W1 (VMEM resident)
        pl.BlockSpec((1, H1),      lambda i: (0, 0)),    # b1
        pl.BlockSpec((H1, H2),     lambda i: (0, 0)),    # W2
        pl.BlockSpec((1, H2),      lambda i: (0, 0)),    # b2
        pl.BlockSpec((H2, NE_PAD), lambda i: (0, 0)),    # W3 (lane-padded)
        pl.BlockSpec((1, NE_PAD),  lambda i: (0, 0)),    # b3 (padded / masked)
    ]
    # Narrow output: block last dim == full array dim (num_experts) -> legal;
    # avoids a 32x over-wide padded output + a separate host-side slice pass.
    out_spec = pl.BlockSpec((tm, num_experts), lambda i: (i, 0))

    return pl.pallas_call(
        kernel,
        out_shape=jax.ShapeDtypeStruct((batch, num_experts), jnp.float32),
        grid=grid,
        in_specs=in_specs,
        out_specs=out_spec,
        compiler_params=pltpu.CompilerParams(
            dimension_semantics=("parallel",)),          # megacore split on v7x
    )(x, prep["w1"], prep["b1"], prep["w2"], prep["b2"], prep["w3"], prep["b3"])


# -----------------------------------------------------------------------------
# Synthetic params + pure-JAX reference for verification
# -----------------------------------------------------------------------------
def init_params(key, input_dim, num_experts):
    """Deterministic synthetic parameters matching nn.Module shapes."""
    ks = jax.random.split(key, 8)

    def linear(kw, kb, fan_in, fan_out):
        bound = 1.0 / jnp.sqrt(fan_in)
        w = jax.random.uniform(kw, (fan_in, fan_out), jnp.float32, -bound, bound)
        b = jax.random.uniform(kb, (1, fan_out), jnp.float32, -bound, bound)
        return w, b

    w1, b1 = linear(ks[0], ks[1], input_dim, H1)
    w2, b2 = linear(ks[2], ks[3], H1, H2)
    w3, b3 = linear(ks[4], ks[5], H2, num_experts)

    def bn(kg, n):
        g = 1.0 + 0.1 * jax.random.normal(kg, (1, n), jnp.float32)
        be = 0.05 * jnp.ones((1, n), jnp.float32)
        rm = 0.1 * jnp.ones((1, n), jnp.float32)
        rv = jnp.ones((1, n), jnp.float32) * 1.5
        return g, be, rm, rv

    g1, be1, rm1, rv1 = bn(ks[6], H1)
    g2, be2, rm2, rv2 = bn(ks[7], H2)

    return dict(
        w1=w1, b1=b1, g1=g1, be1=be1, rm1=rm1, rv1=rv1,
        w2=w2, b2=b2, g2=g2, be2=be2, rm2=rm2, rv2=rv2,
        w3=w3, b3=b3,
    )


def gating_reference(x, p):
    """Pure-JAX reference for numerical verification (un-folded BN)."""
    h = x @ p["w1"] + p["b1"]
    h = (h - p["rm1"]) / jnp.sqrt(p["rv1"] + BN_EPS) * p["g1"] + p["be1"]
    h = jnp.where(h > 0, h, LEAKY_SLOPE * h)
    h = h @ p["w2"] + p["b2"]
    h = (h - p["rm2"]) / jnp.sqrt(p["rv2"] + BN_EPS) * p["g2"] + p["be2"]
    h = jnp.where(h > 0, h, LEAKY_SLOPE * h)
    logits = h @ p["w3"] + p["b3"]
    return jax.nn.softmax(logits, axis=1)


if __name__ == "__main__":
    key = jax.random.PRNGKey(0)
    kx, kp, kx2 = jax.random.split(key, 3)

    input_dim = 96       # docstring: x is (batch, 96)
    num_experts = 4      # docstring: softmax_weights is (batch, 4)

    params = init_params(kp, input_dim, num_experts)
    prep = prepare_gating_params(params)          # hoisted: runs once, not per call

    # --- small batch, single grid step ---
    batch = 8
    x = jax.random.normal(kx, (batch, input_dim), jnp.float32)
    out = jax.block_until_ready(gating_forward(x, prep))
    ref = gating_reference(x, params)
    assert out.shape == (batch, num_experts)
    assert jnp.allclose(jnp.sum(out, axis=1), jnp.ones(batch), atol=1e-6), \
        "Weights are not summed to 1"
    assert jnp.allclose(out, ref, atol=1e-5, rtol=1e-5), "Mismatch vs reference"

    # --- non-divisible batch: multi-step grid + partial (masked) last tile ---
    batch2 = 50
    x2 = jax.random.normal(kx2, (batch2, input_dim), jnp.float32)
    out2 = jax.block_until_ready(gating_forward(x2, prep, tile_m=16))
    ref2 = gating_reference(x2, params)
    assert out2.shape == (batch2, num_experts)
    assert jnp.allclose(jnp.sum(out2, axis=1), jnp.ones(batch2), atol=1e-6), \
        "Weights are not summed to 1 (partial tile)"
    assert jnp.allclose(out2, ref2, atol=1e-5, rtol=1e-5), \
        "Mismatch vs reference (partial tile)"

    print("KERNEL_OK")
</pallas_src>

<mosaic_0001>
module attributes {stable_mosaic.version = 11 : i64} {
  func.func @_gating_kernel(%arg0: i32, %arg1: memref<8x96xf32, #tpu.memory_space<vmem>>, %arg2: memref<96x128xf32, #tpu.memory_space<vmem>>, %arg3: memref<1x128xf32, #tpu.memory_space<vmem>>, %arg4: memref<128x256xf32, #tpu.memory_space<vmem>>, %arg5: memref<1x256xf32, #tpu.memory_space<vmem>>, %arg6: memref<256x128xf32, #tpu.memory_space<vmem>>, %arg7: memref<1x128xf32, #tpu.memory_space<vmem>>, %arg8: memref<8x4xf32, #tpu.memory_space<vmem>>) attributes {dimension_semantics = [#tpu.dimension_semantics<parallel>], iteration_bounds = array<i64: 1>, scalar_prefetch = 0 : i64, scratch_operands = 0 : i64, tpu.core_type = #tpu.core_type<tc>, window_params = [{transform_indices = @transform_0, window_bounds = array<i64: 8, 96>}, {pipeline_mode = #tpu.pipeline_mode<synchronous>, transform_indices = @transform_1, window_bounds = array<i64: 96, 128>}, {pipeline_mode = #tpu.pipeline_mode<synchronous>, transform_indices = @transform_2, window_bounds = array<i64: 1, 128>}, {pipeline_mode = #tpu.pipeline_mode<synchronous>, transform_indices = @transform_3, window_bounds = array<i64: 128, 256>}, {pipeline_mode = #tpu.pipeline_mode<synchronous>, transform_indices = @transform_4, window_bounds = array<i64: 1, 256>}, {pipeline_mode = #tpu.pipeline_mode<synchronous>, transform_indices = @transform_5, window_bounds = array<i64: 256, 128>}, {pipeline_mode = #tpu.pipeline_mode<synchronous>, transform_indices = @transform_6, window_bounds = array<i64: 1, 128>}, {transform_indices = @transform_7, window_bounds = array<i64: 8, 4>}]} {
    %c0 = arith.constant 0 : index
    %c0_0 = arith.constant 0 : index
    %0 = vector.load %arg1[%c0, %c0_0] : memref<8x96xf32, #tpu.memory_space<vmem>>, vector<8x96xf32>
    %c0_1 = arith.constant 0 : index
    %c0_2 = arith.constant 0 : index
    %1 = vector.load %arg2[%c0_1, %c0_2] : memref<96x128xf32, #tpu.memory_space<vmem>>, vector<96x128xf32>
    %cst = arith.constant dense<0.000000e+00> : vector<8x128xf32>
    %2 = tpu.matmul %0, %1, %cst {dimension_numbers = #tpu.dot_dimension_numbers<[1], [0], [0], [1], [0, 0, 1, 1], [], []>} : vector<8x96xf32>, vector<96x128xf32>, vector<8x128xf32> -> vector<8x128xf32>
    %c0_3 = arith.constant 0 : index
    %c0_4 = arith.constant 0 : index
    %3 = vector.load %arg3[%c0_3, %c0_4] : memref<1x128xf32, #tpu.memory_space<vmem>>, vector<1x128xf32>
    %4 = vector.broadcast %3 : vector<1x128xf32> to vector<8x128xf32>
    %5 = arith.addf %2, %4 : vector<8x128xf32>
    %cst_5 = arith.constant 0.00999999977 : f32
    %6 = vector.broadcast %cst_5 : f32 to vector<8x128xf32>
    %7 = arith.mulf %6, %5 : vector<8x128xf32>
    %8 = arith.maximumf %5, %7 : vector<8x128xf32>
    %c0_6 = arith.constant 0 : index
    %c0_7 = arith.constant 0 : index
    %9 = vector.load %arg4[%c0_6, %c0_7] : memref<128x256xf32, #tpu.memory_space<vmem>>, vector<128x256xf32>
    %cst_8 = arith.constant dense<0.000000e+00> : vector<8x256xf32>
    %10 = tpu.matmul %8, %9, %cst_8 {dimension_numbers = #tpu.dot_dimension_numbers<[1], [0], [0], [1], [0, 0, 1, 1], [], []>} : vector<8x128xf32>, vector<128x256xf32>, vector<8x256xf32> -> vector<8x256xf32>
    %c0_9 = arith.constant 0 : index
    %c0_10 = arith.constant 0 : index
    %11 = vector.load %arg5[%c0_9, %c0_10] : memref<1x256xf32, #tpu.memory_space<vmem>>, vector<1x256xf32>
    %12 = vector.broadcast %11 : vector<1x256xf32> to vector<8x256xf32>
    %13 = arith.addf %10, %12 : vector<8x256xf32>
    %cst_11 = arith.constant 0.00999999977 : f32
    %14 = vector.broadcast %cst_11 : f32 to vector<8x256xf32>
    %15 = arith.mulf %14, %13 : vector<8x256xf32>
    %16 = arith.maximumf %13, %15 : vector<8x256xf32>
    %c0_12 = arith.constant 0 : index
    %c0_13 = arith.constant 0 : index
    %17 = vector.load %arg6[%c0_12, %c0_13] : memref<256x128xf32, #tpu.memory_space<vmem>>, vector<256x128xf32>
    %cst_14 = arith.constant dense<0.000000e+00> : vector<8x128xf32>
    %18 = tpu.matmul %16, %17, %cst_14 {dimension_numbers = #tpu.dot_dimension_numbers<[1], [0], [0], [1], [0, 0, 1, 1], [], []>} : vector<8x256xf32>, vector<256x128xf32>, vector<8x128xf32> -> vector<8x128xf32>
    %c0_15 = arith.constant 0 : index
    %c0_16 = arith.constant 0 : index
    %19 = vector.load %arg7[%c0_15, %c0_16] : memref<1x128xf32, #tpu.memory_space<vmem>>, vector<1x128xf32>
    %20 = vector.broadcast %19 : vector<1x128xf32> to vector<8x128xf32>
    %21 = arith.addf %18, %20 : vector<8x128xf32>
    %cst_17 = arith.constant dense<0xFF800000> : vector<8xf32>
    %22 = vector.multi_reduction <maximumf>, %21, %cst_17 [1] : vector<8x128xf32> to vector<8xf32>
    %23 = vector.shape_cast %22 : vector<8xf32> to vector<8x1xf32>
    %24 = vector.broadcast %23 : vector<8x1xf32> to vector<8x128xf32>
    %25 = arith.subf %21, %24 : vector<8x128xf32>
    %26 = math.exp %25 : vector<8x128xf32>
    %cst_18 = arith.constant dense<0.000000e+00> : vector<8xf32>
    %27 = vector.multi_reduction <add>, %26, %cst_18 [1] : vector<8x128xf32> to vector<8xf32>
    %28 = vector.shape_cast %27 : vector<8xf32> to vector<8x1xf32>
    %29 = tpu.reciprocal %28 {approx = true} : vector<8x1xf32> -> vector<8x1xf32>
    %30 = arith.mulf %28, %29 : vector<8x1xf32>
    %cst_19 = arith.constant 2.000000e+00 : f32
    %31 = vector.broadcast %cst_19 : f32 to vector<8x1xf32>
    %32 = arith.subf %31, %30 : vector<8x1xf32>
    %33 = arith.mulf %29, %32 : vector<8x1xf32>
    %34 = vector.broadcast %33 : vector<8x1xf32> to vector<8x128xf32>
    %35 = arith.mulf %26, %34 : vector<8x128xf32>
    %36 = vector.extract_strided_slice %35 {offsets = [0, 0], sizes = [8, 4], strides = [1, 1]} : vector<8x128xf32> to vector<8x4xf32>
    %c0_20 = arith.constant 0 : index
    %c0_21 = arith.constant 0 : index
    %37 = vector.load %arg8[%c0_20, %c0_21] : memref<8x4xf32, #tpu.memory_space<vmem>>, vector<8x4xf32>
    tpu.vector_store %arg8[%c0_20, %c0_21], %36 {strides = array<i32>} : memref<8x4xf32, #tpu.memory_space<vmem>>, vector<8x4xf32>,
    return
  }
  func.func @transform_0(%arg0: i32) -> (i32, i32) {
    %c0_i32 = arith.constant 0 : i32
    %c0_i32_0 = arith.constant 0 : i32
    return %arg0, %c0_i32 : i32, i32
  }
  func.func @transform_1(%arg0: i32) -> (i32, i32) {
    %c0_i32 = arith.constant 0 : i32
    %c0_i32_0 = arith.constant 0 : i32
    %c0_i32_1 = arith.constant 0 : i32
    return %c0_i32, %c0_i32_0 : i32, i32
  }
  func.func @transform_2(%arg0: i32) -> (i32, i32) {
    %c0_i32 = arith.constant 0 : i32
    %c0_i32_0 = arith.constant 0 : i32
    %c0_i32_1 = arith.constant 0 : i32
    return %c0_i32, %c0_i32_0 : i32, i32
  }
  func.func @transform_3(%arg0: i32) -> (i32, i32) {
    %c0_i32 = arith.constant 0 : i32
    %c0_i32_0 = arith.constant 0 : i32
    %c0_i32_1 = arith.constant 0 : i32
    return %c0_i32, %c0_i32_0 : i32, i32
  }
  func.func @transform_4(%arg0: i32) -> (i32, i32) {
    %c0_i32 = arith.constant 0 : i32
    %c0_i32_0 = arith.constant 0 : i32
    %c0_i32_1 = arith.constant 0 : i32
    return %c0_i32, %c0_i32_0 : i32, i32
  }
  func.func @transform_5(%arg0: i32) -> (i32, i32) {
    %c0_i32 = arith.constant 0 : i32
    %c0_i32_0 = arith.constant 0 : i32
    %c0_i32_1 = arith.constant 0 : i32
    return %c0_i32, %c0_i32_0 : i32, i32
  }
  func.func @transform_6(%arg0: i32) -> (i32, i32) {
    %c0_i32 = arith.constant 0 : i32
    %c0_i32_0 = arith.constant 0 : i32
    %c0_i32_1 = arith.constant 0 : i32
    return %c0_i32, %c0_i32_0 : i32, i32
  }
  func.func @transform_7(%arg0: i32) -> (i32, i32) {
    %c0_i32 = arith.constant 0 : i32
    %c0_i32_0 = arith.constant 0 : i32
    return %arg0, %c0_i32 : i32, i32
  }
}

</mosaic_0001>

<llo_original>
// kernel: tpu_custom_call.1
$region0: #{tpu_custom_call.1}
  #allocation0 [shape = 'u32[]', space=smem, size = 0x4, offset = 0x4, fixed_abs, tag = 'smem constant byte address 0x4 - core index']
  #allocation1 [shape = 'u32[144,128]{1,0:T(1,128)}', space=vmem, size = 0x12000, scoped, tag = 'internal scratch']
  %s0 = inlined_call_operand.hbm [shape: f32[8,96], index: 0, kind: input, shape index: {}]
  %s1 = inlined_call_operand.hbm [shape: f32[96,128], index: 1, kind: input, shape index: {}]
  %s2 = inlined_call_operand.vmem [shape: f32[1,128], index: 2, kind: input, shape index: {}]
  %s3 = inlined_call_operand.hbm [shape: f32[128,256], index: 3, kind: input, shape index: {}]
  %s4 = inlined_call_operand.vmem [shape: f32[1,256], index: 4, kind: input, shape index: {}]
  %s5 = inlined_call_operand.hbm [shape: f32[256,128], index: 5, kind: input, shape index: {}]
  %s6 = inlined_call_operand.vmem [shape: f32[1,128], index: 6, kind: input, shape index: {}]
  %s7 = inlined_call_operand.vmem [shape: f32[8,4], index: 7, kind: output, shape index: {}]
  %s8 = sld [smem:[#allocation0]]
  $region54: #{tpu_custom_call.1} parent=0
    _
  %s10 = ssub.s32 1, %s8
  %s11 = scalar_select 0, %s10, %s8
  $region1: #{tpu_custom_call.1} parent=0
    #allocation2 [shape = 'u8[4096]{0}', space=vmem, size = 0x1000, scoped, tag = 'input window, operand 0, single buffered']
    #allocation3 [shape = 's32[1]{0}', space=sflag, size = 0x4, scoped, tag = 'scoped memory for tpu_custom_call.1']
    #allocation4 [shape = 'u8[49152]{0}', space=vmem, size = 0xc000, scoped, tag = 'input window, operand 1, single buffered']
    #allocation5 [shape = 's32[1]{0}', space=sflag, size = 0x4, scoped, tag = 'scoped memory for tpu_custom_call.1']
    #allocation6 [shape = 'u8[131072]{0}', space=vmem, size = 0x20000, scoped, tag = 'input window, operand 3, single buffered']
    #allocation7 [shape = 'u8[131072]{0}', space=vmem, size = 0x20000, scoped, tag = 'input window, operand 5, single buffered']
    #allocation8 [shape = 's32[1]{0}', space=sflag, size = 0x4, scoped, tag = 'scoped memory for tpu_custom_call.1']
    %12 = vsyncpa [#allocation3], 0
    %13 = vsyncpa [#allocation5], 0
    %14 = vsyncpa [#allocation8], 0
    // Predicated region
    $region2: #{tpu_custom_call.1} parent=1 // pred_check
      _
    $region3: #{tpu_custom_call.1} parent=1 // pred_check_branch
      %16 = sbr.rel (0) target = $region5
    $region4: #{tpu_custom_call.1} parent=1 // pred_region
      %s18 = ssub.s32 128, 128
      %19 = vsyncadd [#allocation3], %s18
      %s21 = sshll.u32 [#allocation2], 4
      %s22 = int_to_ptr.vmem [resolvable:$true] %s21
      %24 = dma.hbm_to_vmem [thread:$0]  %s0, 128, %s22, [#allocation3]
    $region5: #{tpu_custom_call.1} parent=1 // pred_fallthru
      _
    // Predicated region
    $region6: #{tpu_custom_call.1} parent=1 // pred_check
      _
    $region7: #{tpu_custom_call.1} parent=1 // pred_check_branch
      %26 = sbr.rel (0) target = $region9
    $region8: #{tpu_custom_call.1} parent=1 // pred_region
      %s28 = ssub.s32 1536, 1536
      %29 = vsyncadd [#allocation5], %s28
      %s30 = sshll.u32 [#allocation4], 4
      %s31 = int_to_ptr.vmem [resolvable:$true] %s30
      %36 = dma.hbm_to_vmem [thread:$0]  %s1, 1536, %s31, [#allocation5], 128, 128, 8
    $region9: #{tpu_custom_call.1} parent=1 // pred_fallthru
      _
    // Predicated region
    $region10: #{tpu_custom_call.1} parent=1 // pred_check
      _
    $region11: #{tpu_custom_call.1} parent=1 // pred_check_branch
      %38 = sbr.rel (0) target = $region13
    $region12: #{tpu_custom_call.1} parent=1 // pred_region
      _
    $region13: #{tpu_custom_call.1} parent=1 // pred_fallthru
      _
    // Predicated region
    $region14: #{tpu_custom_call.1} parent=1 // pred_check
      _
    $region15: #{tpu_custom_call.1} parent=1 // pred_check_branch
      %40 = sbr.rel (0) target = $region17
    $region16: #{tpu_custom_call.1} parent=1 // pred_region
      %s42 = ssub.s32 4096, 4096
      %43 = vsyncadd [#allocation5], %s42
      %s44 = sshll.u32 [#allocation6], 4
      %s45 = int_to_ptr.vmem [resolvable:$true] %s44
      %50 = dma.hbm_to_vmem [thread:$0]  %s3, 4096, %s45, [#allocation5], 256, 256, 16
    $region17: #{tpu_custom_call.1} parent=1 // pred_fallthru
      _
    // Predicated region
    $region18: #{tpu_custom_call.1} parent=1 // pred_check
      _
    $region19: #{tpu_custom_call.1} parent=1 // pred_check_branch
      %52 = sbr.rel (0) target = $region21
    $region20: #{tpu_custom_call.1} parent=1 // pred_region
      _
    $region21: #{tpu_custom_call.1} parent=1 // pred_fallthru
      _
    // Predicated region
    $region22: #{tpu_custom_call.1} parent=1 // pred_check
      _
    $region23: #{tpu_custom_call.1} parent=1 // pred_check_branch
      %54 = sbr.rel (0) target = $region25
    $region24: #{tpu_custom_call.1} parent=1 // pred_region
      %s56 = ssub.s32 4096, 4096
      %57 = vsyncadd [#allocation8], %s56
      %s58 = sshll.u32 [#allocation7], 4
      %s59 = int_to_ptr.vmem [resolvable:$true] %s58
      %64 = dma.hbm_to_vmem [thread:$0]  %s5, 4096, %s59, [#allocation8], 128, 128, 8
    $region25: #{tpu_custom_call.1} parent=1 // pred_fallthru
      _
    // Predicated region
    $region26: #{tpu_custom_call.1} parent=1 // pred_check
      _
    $region27: #{tpu_custom_call.1} parent=1 // pred_check_branch
      %66 = sbr.rel (0) target = $region29
    $region28: #{tpu_custom_call.1} parent=1 // pred_region
      _
    $region29: #{tpu_custom_call.1} parent=1 // pred_fallthru
      _
    // Predicated region
    $region30: #{tpu_custom_call.1} parent=1 // pred_check
      _
    $region31: #{tpu_custom_call.1} parent=1 // pred_check_branch
      %68 = sbr.rel (0) target = $region33
    $region32: #{tpu_custom_call.1} parent=1 // pred_region
      %69 = dma.done [#allocation3], 128
    $region33: #{tpu_custom_call.1} parent=1 // pred_fallthru
      _
    // Predicated region
    $region34: #{tpu_custom_call.1} parent=1 // pred_check
      _
    $region35: #{tpu_custom_call.1} parent=1 // pred_check_branch
      %71 = sbr.rel (0) target = $region37
    $region36: #{tpu_custom_call.1} parent=1 // pred_region
      %72 = dma.done [#allocation5], 1536
    $region37: #{tpu_custom_call.1} parent=1 // pred_fallthru
      _
    // Predicated region
    $region38: #{tpu_custom_call.1} parent=1 // pred_check
      _
    $region39: #{tpu_custom_call.1} parent=1 // pred_check_branch
      %74 = sbr.rel (0) target = $region41
    $region40: #{tpu_custom_call.1} parent=1 // pred_region
      %75 = dma.done [#allocation5], 4096
    $region41: #{tpu_custom_call.1} parent=1 // pred_fallthru
      _
    // Predicated region
    $region42: #{tpu_custom_call.1} parent=1 // pred_check
      _
    $region43: #{tpu_custom_call.1} parent=1 // pred_check_branch
      %77 = sbr.rel (0) target = $region45
    $region44: #{tpu_custom_call.1} parent=1 // pred_region
      %78 = dma.done [#allocation8], 4096
    $region45: #{tpu_custom_call.1} parent=1 // pred_fallthru
      _
    %v79 = vld [vmem:[#allocation2] sm:$0xff]
    %v80 = vld [vmem:[#allocation4] sm:$0xff]
    %v81 = vld [vmem:[#allocation4 + $0x8] sm:$0xff]
    %v82 = vld [vmem:[#allocation4 + $0x10] sm:$0xff]
    %v83 = vld [vmem:[#allocation4 + $0x18] sm:$0xff]
    %v84 = vld [vmem:[#allocation4 + $0x20] sm:$0xff]
    %v85 = vld [vmem:[#allocation4 + $0x28] sm:$0xff]
    %v86 = vld [vmem:[#allocation4 + $0x30] sm:$0xff]
    %v87 = vld [vmem:[#allocation4 + $0x38] sm:$0xff]
    %v88 = vld [vmem:[#allocation4 + $0x40] sm:$0xff]
    %v89 = vld [vmem:[#allocation4 + $0x48] sm:$0xff]
    %v90 = vld [vmem:[#allocation4 + $0x50] sm:$0xff]
    %v91 = vld [vmem:[#allocation4 + $0x58] sm:$0xff]
    %v92 = vld [vmem:[%s2] sm:$0x1]
    %v94 = vlaneseq
    %v95 = vshrl.u32 %v94, 7
    %v96 = vsub.s32 0, %v95
    %v97 = vrot.slane %v92, %v96
    %vm99 = vcmask 785408
    %v101 = vsel %vm99, %v79, 0
    %103 = vmatprep.subr.mxu0 0.0
    %104 = vmatpush1.msra.mxu0 0.0
    %105 = vmatprep.subr.mxu0 0.0
    %106 = vmatpush1.msra.mxu0 0.0
    %107 = vmatprep.subr.mxu0 0.0
    %108 = vmatpush1.msra.mxu0 0.0
    %109 = vmatprep.subr.mxu0 0.0
    %110 = vmatpush1.msra.mxu0 0.0
    %111 = vmatprep.subr.mxu0 0.0
    %112 = vmatpush1.msra.mxu0 %v91
    %113 = vmatprep.subr.mxu0 0.0
    %114 = vmatpush1.msra.mxu0 %v90
    %115 = vmatprep.subr.mxu0 0.0
    %116 = vmatpush1.msra.mxu0 %v89
    %117 = vmatprep.subr.mxu0 0.0
    %118 = vmatpush1.msra.mxu0 %v88
    %119 = vmatprep.subr.mxu0 0.0
    %120 = vmatpush1.msra.mxu0 %v87
    %121 = vmatprep.subr.mxu0 0.0
    %122 = vmatpush1.msra.mxu0 %v86
    %123 = vmatprep.subr.mxu0 0.0
    %124 = vmatpush1.msra.mxu0 %v85
    %125 = vmatprep.subr.mxu0 0.0
    %126 = vmatpush1.msra.mxu0 %v84
    %127 = vmatprep.subr.mxu0 0.0
    %128 = vmatpush1.msra.mxu0 %v83
    %129 = vmatprep.subr.mxu0 0.0
    %130 = vmatpush1.msra.mxu0 %v82
    %131 = vmatprep.subr.mxu0 0.0
    %132 = vmatpush1.msra.mxu0 %v81
    %133 = vmatprep.subr.mxu0 0.0
    %134 = vmatpush1.msra.mxu0 %v80
    %135 = vmatprep.subr.mxu0 0.0
    %136 = vmatpush2.msra.mxu0 0.0
    %137 = vmatprep.subr.mxu0 0.0
    %138 = vmatpush2.msra.mxu0 0.0
    %139 = vmatprep.subr.mxu0 0.0
    %140 = vmatpush2.msra.mxu0 0.0
    %141 = vmatprep.subr.mxu0 0.0
    %142 = vmatpush2.msra.mxu0 0.0
    %143 = vmatprep.subr.mxu0 0.0
    %144 = vmatpush2.msra.mxu0 0.0
    %145 = vmatprep.subr.mxu0 0.0
    %146 = vmatpush2.msra.mxu0 0.0
    %147 = vmatprep.subr.mxu0 0.0
    %148 = vmatpush2.msra.mxu0 0.0
    %149 = vmatprep.subr.mxu0 0.0
    %150 = vmatpush2.msra.mxu0 0.0
    %151 = vmatprep.subr.mxu0 0.0
    %152 = vmatpush2.msra.mxu0 0.0
    %153 = vmatprep.subr.mxu0 0.0
    %154 = vmatpush2.msra.mxu0 0.0
    %155 = vmatprep.subr.mxu0 0.0
    %156 = vmatpush2.msra.mxu0 0.0
    %157 = vmatprep.subr.mxu0 0.0
    %158 = vmatpush2.msra.mxu0 0.0
    %159 = vmatprep.subr.mxu0 0.0
    %160 = vmatpush2.msra.mxu0 0.0
    %161 = vmatprep.subr.mxu0 0.0
    %162 = vmatpush2.msra.mxu0 0.0
    %163 = vmatprep.subr.mxu0 0.0
    %164 = vmatpush2.msra.mxu0 0.0
    %165 = vmatprep.subr.mxu0 0.0
    %166 = vmatpush2.msra.mxu0 0.0
    %167 = vmatprep.mubr.f32.mxu0 0.0
    %168 = vmatmul.mubr.f32.gmra.mxu0 %v101
    %v169 = vpop.f32.mrf.mxu0
    %v170 = vadd.f32 %v97, %v169
    %v171 = vpop.f32.mrf.mxu0
    %172 = vdwg.mxu0
    %v173 = vmul.f32 %v170, 0.01
    %v174 = vmax.f32 %v170, %v173
    %v175 = vld [vmem:[#allocation6] sm:$0xff]
    %v176 = vld [vmem:[#allocation6 + $0x8] sm:$0xff]
    %v177 = vld [vmem:[#allocation6 + $0x10] sm:$0xff]
    %v178 = vld [vmem:[#allocation6 + $0x18] sm:$0xff]
    %v179 = vld [vmem:[#allocation6 + $0x20] sm:$0xff]
    %v180 = vld [vmem:[#allocation6 + $0x28] sm:$0xff]
    %v181 = vld [vmem:[#allocation6 + $0x30] sm:$0xff]
    %v182 = vld [vmem:[#allocation6 + $0x38] sm:$0xff]
    %v183 = vld [vmem:[#allocation6 + $0x40] sm:$0xff]
    %v184 = vld [vmem:[#allocation6 + $0x48] sm:$0xff]
    %v185 = vld [vmem:[#allocation6 + $0x50] sm:$0xff]
    %v186 = vld [vmem:[#allocation6 + $0x58] sm:$0xff]
    %v187 = vld [vmem:[#allocation6 + $0x60] sm:$0xff]
    %v188 = vld [vmem:[#allocation6 + $0x68] sm:$0xff]
    %v189 = vld [vmem:[#allocation6 + $0x70] sm:$0xff]
    %v190 = vld [vmem:[#allocation6 + $0x78] sm:$0xff]
    %v191 = vld [vmem:[#allocation6 + $0x80] sm:$0xff]
    %v192 = vld [vmem:[#allocation6 + $0x88] sm:$0xff]
    %v193 = vld [vmem:[#allocation6 + $0x90] sm:$0xff]
    %v194 = vld [vmem:[#allocation6 + $0x98] sm:$0xff]
    %v195 = vld [vmem:[#allocation6 + $0xa0] sm:$0xff]
    %v196 = vld [vmem:[#allocation6 + $0xa8] sm:$0xff]
    %v197 = vld [vmem:[#allocation6 + $0xb0] sm:$0xff]
    %v198 = vld [vmem:[#allocation6 + $0xb8] sm:$0xff]
    %v199 = vld [vmem:[#allocation6 + $0xc0] sm:$0xff]
    %v200 = vld [vmem:[#allocation6 + $0xc8] sm:$0xff]
    %v201 = vld [vmem:[#allocation6 + $0xd0] sm:$0xff]
    %v202 = vld [vmem:[#allocation6 + $0xd8] sm:$0xff]
    %v203 = vld [vmem:[#allocation6 + $0xe0] sm:$0xff]
    %v204 = vld [vmem:[#allocation6 + $0xe8] sm:$0xff]
    %v205 = vld [vmem:[#allocation6 + $0xf0] sm:$0xff]
    %v206 = vld [vmem:[#allocation6 + $0xf8] sm:$0xff]
    %v207 = vld [vmem:[%s4] sm:$0x3]
    %v209 = vlaneseq
    %v210 = vshrl.u32 %v209, 7
    %v211 = vsub.s32 0, %v210
    %v212 = vrot.slane %v207, %v211
    %v213 = vlaneseq
    %v214 = vshrl.u32 %v213, 7
    %v215 = vsub.s32 1, %v214
    %v216 = vrot.slane %v207, %v215
    %219 = vmatprep.subr.mxu0 %v206
    %220 = vmatpush1.msra.mxu0 %v205
    %221 = vmatprep.subr.mxu0 %v204
    %222 = vmatpush1.msra.mxu0 %v203
    %223 = vmatprep.subr.mxu0 %v202
    %224 = vmatpush1.msra.mxu0 %v201
    %225 = vmatprep.subr.mxu0 %v200
    %226 = vmatpush1.msra.mxu0 %v199
    %227 = vmatprep.subr.mxu0 %v198
    %228 = vmatpush1.msra.mxu0 %v197
    %229 = vmatprep.subr.mxu0 %v196
    %230 = vmatpush1.msra.mxu0 %v195
    %231 = vmatprep.subr.mxu0 %v194
    %232 = vmatpush1.msra.mxu0 %v193
    %233 = vmatprep.subr.mxu0 %v192
    %234 = vmatpush1.msra.mxu0 %v191
    %235 = vmatprep.subr.mxu0 %v190
    %236 = vmatpush1.msra.mxu0 %v189
    %237 = vmatprep.subr.mxu0 %v188
    %238 = vmatpush1.msra.mxu0 %v187
    %239 = vmatprep.subr.mxu0 %v186
    %240 = vmatpush1.msra.mxu0 %v185
    %241 = vmatprep.subr.mxu0 %v184
    %242 = vmatpush1.msra.mxu0 %v183
    %243 = vmatprep.subr.mxu0 %v182
    %244 = vmatpush1.msra.mxu0 %v181
    %245 = vmatprep.subr.mxu0 %v180
    %246 = vmatpush1.msra.mxu0 %v179
    %247 = vmatprep.subr.mxu0 %v178
    %248 = vmatpush1.msra.mxu0 %v177
    %249 = vmatprep.subr.mxu0 %v176
    %250 = vmatpush1.msra.mxu0 %v175
    %251 = vmatprep.subr.mxu0 0.0
    %252 = vmatpush2.msra.mxu0 0.0
    %253 = vmatprep.subr.mxu0 0.0
    %254 = vmatpush2.msra.mxu0 0.0
    %255 = vmatprep.subr.mxu0 0.0
    %256 = vmatpush2.msra.mxu0 0.0
    %257 = vmatprep.subr.mxu0 0.0
    %258 = vmatpush2.msra.mxu0 0.0
    %259 = vmatprep.subr.mxu0 0.0
    %260 = vmatpush2.msra.mxu0 0.0
    %261 = vmatprep.subr.mxu0 0.0
    %262 = vmatpush2.msra.mxu0 0.0
    %263 = vmatprep.subr.mxu0 0.0
    %264 = vmatpush2.msra.mxu0 0.0
    %265 = vmatprep.subr.mxu0 0.0
    %266 = vmatpush2.msra.mxu0 0.0
    %267 = vmatprep.subr.mxu0 0.0
    %268 = vmatpush2.msra.mxu0 0.0
    %269 = vmatprep.subr.mxu0 0.0
    %270 = vmatpush2.msra.mxu0 0.0
    %271 = vmatprep.subr.mxu0 0.0
    %272 = vmatpush2.msra.mxu0 0.0
    %273 = vmatprep.subr.mxu0 0.0
    %274 = vmatpush2.msra.mxu0 0.0
    %275 = vmatprep.subr.mxu0 0.0
    %276 = vmatpush2.msra.mxu0 0.0
    %277 = vmatprep.subr.mxu0 0.0
    %278 = vmatpush2.msra.mxu0 0.0
    %279 = vmatprep.subr.mxu0 0.0
    %280 = vmatpush2.msra.mxu0 0.0
    %281 = vmatprep.subr.mxu0 0.0
    %282 = vmatpush2.msra.mxu0 0.0
    %283 = vmatprep.mubr.f32.mxu0 0.0
    %284 = vmatmul.mubr.f32.gmra.mxu0 %v174
    %v285 = vpop.f32.mrf.mxu0
    %v286 = vadd.f32 %v212, %v285
    %v287 = vpop.f32.mrf.mxu0
    %v288 = vadd.f32 %v216, %v287
    %289 = vdwg.mxu0
    %v290 = vmul.f32 %v286, 0.01
    %v291 = vmul.f32 %v288, 0.01
    %v292 = vmax.f32 %v286, %v290
    %v293 = vmax.f32 %v288, %v291
    %v294 = vld [vmem:[#allocation7] sm:$0xff]
    %v295 = vld [vmem:[#allocation7 + $0x8] sm:$0xff]
    %v296 = vld [vmem:[#allocation7 + $0x10] sm:$0xff]
    %v297 = vld [vmem:[#allocation7 + $0x18] sm:$0xff]
    %v298 = vld [vmem:[#allocation7 + $0x20] sm:$0xff]
    %v299 = vld [vmem:[#allocation7 + $0x28] sm:$0xff]
    %v300 = vld [vmem:[#allocation7 + $0x30] sm:$0xff]
    %v301 = vld [vmem:[#allocation7 + $0x38] sm:$0xff]
    %v302 = vld [vmem:[#allocation7 + $0x40] sm:$0xff]
    %v303 = vld [vmem:[#allocation7 + $0x48] sm:$0xff]
    %v304 = vld [vmem:[#allocation7 + $0x50] sm:$0xff]
    %v305 = vld [vmem:[#allocation7 + $0x58] sm:$0xff]
    %v306 = vld [vmem:[#allocation7 + $0x60] sm:$0xff]
    %v307 = vld [vmem:[#allocation7 + $0x68] sm:$0xff]
    %v308 = vld [vmem:[#allocation7 + $0x70] sm:$0xff]
    %v309 = vld [vmem:[#allocation7 + $0x78] sm:$0xff]
    %v310 = vld [vmem:[#allocation7 + $0x80] sm:$0xff]
    %v311 = vld [vmem:[#allocation7 + $0x88] sm:$0xff]
    %v312 = vld [vmem:[#allocation7 + $0x90] sm:$0xff]
    %v313 = vld [vmem:[#allocation7 + $0x98] sm:$0xff]
    %v314 = vld [vmem:[#allocation7 + $0xa0] sm:$0xff]
    %v315 = vld [vmem:[#allocation7 + $0xa8] sm:$0xff]
    %v316 = vld [vmem:[#allocation7 + $0xb0] sm:$0xff]
    %v317 = vld [vmem:[#allocation7 + $0xb8] sm:$0xff]
    %v318 = vld [vmem:[#allocation7 + $0xc0] sm:$0xff]
    %v319 = vld [vmem:[#allocation7 + $0xc8] sm:$0xff]
    %v320 = vld [vmem:[#allocation7 + $0xd0] sm:$0xff]
    %v321 = vld [vmem:[#allocation7 + $0xd8] sm:$0xff]
    %v322 = vld [vmem:[#allocation7 + $0xe0] sm:$0xff]
    %v323 = vld [vmem:[#allocation7 + $0xe8] sm:$0xff]
    %v324 = vld [vmem:[#allocation7 + $0xf0] sm:$0xff]
    %v325 = vld [vmem:[#allocation7 + $0xf8] sm:$0xff]
    %v326 = vld [vmem:[%s6] sm:$0x1]
    %v328 = vlaneseq
    %v329 = vshrl.u32 %v328, 7
    %v330 = vsub.s32 0, %v329
    %v331 = vrot.slane %v326, %v330
    %333 = vmatprep.subr.mxu0 0.0
    %334 = vmatpush1.msra.mxu0 %v309
    %335 = vmatprep.subr.mxu0 0.0
    %336 = vmatpush1.msra.mxu0 %v308
    %337 = vmatprep.subr.mxu0 0.0
    %338 = vmatpush1.msra.mxu0 %v307
    %339 = vmatprep.subr.mxu0 0.0
    %340 = vmatpush1.msra.mxu0 %v306
    %341 = vmatprep.subr.mxu0 0.0
    %342 = vmatpush1.msra.mxu0 %v305
    %343 = vmatprep.subr.mxu0 0.0
    %344 = vmatpush1.msra.mxu0 %v304
    %345 = vmatprep.subr.mxu0 0.0
    %346 = vmatpush1.msra.mxu0 %v303
    %347 = vmatprep.subr.mxu0 0.0
    %348 = vmatpush1.msra.mxu0 %v302
    %349 = vmatprep.subr.mxu0 0.0
    %350 = vmatpush1.msra.mxu0 %v301
    %351 = vmatprep.subr.mxu0 0.0
    %352 = vmatpush1.msra.mxu0 %v300
    %353 = vmatprep.subr.mxu0 0.0
    %354 = vmatpush1.msra.mxu0 %v299
    %355 = vmatprep.subr.mxu0 0.0
    %356 = vmatpush1.msra.mxu0 %v298
    %357 = vmatprep.subr.mxu0 0.0
    %358 = vmatpush1.msra.mxu0 %v297
    %359 = vmatprep.subr.mxu0 0.0
    %360 = vmatpush1.msra.mxu0 %v296
    %361 = vmatprep.subr.mxu0 0.0
    %362 = vmatpush1.msra.mxu0 %v295
    %363 = vmatprep.subr.mxu0 0.0
    %364 = vmatpush1.msra.mxu0 %v294
    %365 = vmatprep.subr.mxu0 0.0
    %366 = vmatpush2.msra.mxu0 %v325
    %367 = vmatprep.subr.mxu0 0.0
    %368 = vmatpush2.msra.mxu0 %v324
    %369 = vmatprep.subr.mxu0 0.0
    %370 = vmatpush2.msra.mxu0 %v323
    %371 = vmatprep.subr.mxu0 0.0
    %372 = vmatpush2.msra.mxu0 %v322
    %373 = vmatprep.subr.mxu0 0.0
    %374 = vmatpush2.msra.mxu0 %v321
    %375 = vmatprep.subr.mxu0 0.0
    %376 = vmatpush2.msra.mxu0 %v320
    %377 = vmatprep.subr.mxu0 0.0
    %378 = vmatpush2.msra.mxu0 %v319
    %379 = vmatprep.subr.mxu0 0.0
    %380 = vmatpush2.msra.mxu0 %v318
    %381 = vmatprep.subr.mxu0 0.0
    %382 = vmatpush2.msra.mxu0 %v317
    %383 = vmatprep.subr.mxu0 0.0
    %384 = vmatpush2.msra.mxu0 %v316
    %385 = vmatprep.subr.mxu0 0.0
    %386 = vmatpush2.msra.mxu0 %v315
    %387 = vmatprep.subr.mxu0 0.0
    %388 = vmatpush2.msra.mxu0 %v314
    %389 = vmatprep.subr.mxu0 0.0
    %390 = vmatpush2.msra.mxu0 %v313
    %391 = vmatprep.subr.mxu0 0.0
    %392 = vmatpush2.msra.mxu0 %v312
    %393 = vmatprep.subr.mxu0 0.0
    %394 = vmatpush2.msra.mxu0 %v311
    %395 = vmatprep.subr.mxu0 0.0
    %396 = vmatpush2.msra.mxu0 %v310
    %397 = vmatprep.mubr.f32.mxu0 %v293
    %398 = vmatmul.mubr.f32.gmra.mxu0 %v292
    %v399 = vpop.f32.mrf.mxu0
    %v400 = vadd.f32 %v331, %v399
    %v401 = vpop.f32.mrf.mxu0
    %402 = vdwg.mxu0
    %403 = vmax.xlane.f32.xlu0 %v400
    %v404 = vpop.xlane.xlu0 %403
    %v405 = vsub.f32 %v400, %v404
    %v406 = vmul.f32 %v405, 1.442695
    %v407 = vpow.pop %v406
    %408 = vadd.xlane.f32.xlu0 %v407
    %v409 = vpop.xlane.xlu0 %408
    %v410 = vrcp.pop %v409
    %v411 = vmul.f32 %v409, %v410
    %v412 = vsub.f32 2.0, %v411
    %v413 = vmul.f32 %v410, %v412
    %v414 = vmul.f32 %v407, %v413
    %vm415 = vcmask 31744
    %416 = vst.msk [vmem:[%s7] sm:$0xff] %vm415, %v414
    // Predicated region
    $region46: #{tpu_custom_call.1} parent=1 // pred_check
      _
    $region47: #{tpu_custom_call.1} parent=1 // pred_check_branch
      %418 = sbr.rel (0) target = $region49
    $region48: #{tpu_custom_call.1} parent=1 // pred_region
      _
    $region49: #{tpu_custom_call.1} parent=1 // pred_fallthru
      _
    // Predicated region
    $region50: #{tpu_custom_call.1} parent=1 // pred_check
      _
    $region51: #{tpu_custom_call.1} parent=1 // pred_check_branch
      %420 = sbr.rel (0) target = $region53
    $region52: #{tpu_custom_call.1} parent=1 // pred_region
      _
    $region53: #{tpu_custom_call.1} parent=1 // pred_fallthru
      _
    %421 = vsyncpa [#allocation3], 1
    %422 = vsyncpa [#allocation5], 1
    %423 = vsyncpa [#allocation8], 1

</llo_original>
